<compile_context>
chip_gen: v7x
topology: tpu7x:2x2x1
jax: 0.10.0
libtpu: 0.0.40
codegen_flags: <defaults>
</compile_context>

<pallas_src>
import jax
import jax.numpy as jnp
from jax.experimental import pallas as pl
from jax.experimental.pallas import tpu as pltpu

INPUT_SIZE = 100
NUM_CLASSES = 2

_SUBLANE = 8

# Batches up to this take the no-grid path: whole problem sits in VMEM with
# zero per-step bookkeeping (f32 x at 16384 rows is ~6.3 MiB).
_GRIDLESS_MAX_ROWS = 16384
# Largest batch tile for the grid path: 8192*100*4 B = 3.2 MiB, 6.4 MiB double
# buffered -> fits every generation's default scoped VMEM while amortizing the
# ~0.35 us/step grid overhead.
_BLOCK_B_MAX = 8192


def _round_up(n, m):
    return ((n + m - 1) // m) * m


def _linear_kernel(x_ref, w_ref, b_ref, o_ref):
    # x_ref: (tm, F) VMEM ; w_ref: (F, C) VMEM ; b_ref: (1, C) VMEM
    # o_ref: (tm, C) VMEM
    acc = jnp.dot(x_ref[...], w_ref[...], preferred_element_type=jnp.float32)
    o_ref[...] = (acc + b_ref[...]).astype(o_ref.dtype)


def simple_classifier(x, w, b, *, block_b=None,
                      gridless_max_rows=_GRIDLESS_MAX_ROWS):
    """Forward pass of SimpleClassifier: y = x @ w + b.

    x: (B, F) float32
    w: (F, C) float32   (PyTorch stores (C, F); we pass the transpose)
    b: (C,)   float32
    """
    B, F = x.shape
    C = w.shape[1]
    b2 = b.reshape(1, C)
    itemsize = x.dtype.itemsize

    cost = pl.CostEstimate(
        flops=2 * B * F * C,
        transcendentals=0,
        bytes_accessed=itemsize * (B * F + F * C + B * C + C),
    )

    if B <= gridless_max_rows:
        # Small/medium batch: no grid at all.  A 1-point grid buys no
        # pipelining and only adds per-step bookkeeping + double buffers.
        # Mosaic pads the internal VMEM layout itself; no host-side padding.
        return pl.pallas_call(
            _linear_kernel,
            out_shape=jax.ShapeDtypeStruct((B, C), x.dtype),
            in_specs=[
                pl.BlockSpec(memory_space=pltpu.MemorySpace.VMEM),  # x
                pl.BlockSpec(memory_space=pltpu.MemorySpace.VMEM),  # w
                pl.BlockSpec(memory_space=pltpu.MemorySpace.VMEM),  # bias
            ],
            out_specs=pl.BlockSpec(memory_space=pltpu.MemorySpace.VMEM),
            cost_estimate=cost,
        )(x, w, b2)

    # Large batch: tile over B.  Weight and bias use the same block every step
    # (stay resident).  The batch axis is embarrassingly parallel ->
    # "parallel" so v7x's two TensorCores can split it.
    if block_b is None:
        # Keep >= ~8 grid steps so both v7x cores get work, capped so the
        # double-buffered x tile fits every generation's default scoped VMEM.
        block_b = min(_BLOCK_B_MAX, _round_up(pl.cdiv(B, 8), _SUBLANE))
    block_b = max(_SUBLANE, _round_up(block_b, _SUBLANE))

    grid = (pl.cdiv(B, block_b),)

    # Double-buffered x/out tiles + resident w/bias.  Only request a larger
    # scoped-VMEM limit when the smallest default (16 MiB on v5e) would not
    # fit; never ask for more than v7x's 64 MiB physical can give.
    vmem_needed = (2 * block_b * (F + C) + 2 * (F * C + C)) * itemsize
    compiler_kwargs = dict(dimension_semantics=("parallel",))
    if vmem_needed > (12 << 20):
        compiler_kwargs["vmem_limit_bytes"] = min(
            int(vmem_needed * 1.5) + (4 << 20), 48 << 20)

    return pl.pallas_call(
        _linear_kernel,
        out_shape=jax.ShapeDtypeStruct((B, C), x.dtype),
        grid=grid,
        in_specs=[
            pl.BlockSpec((block_b, F), lambda i: (i, 0)),   # x tile
            pl.BlockSpec((F, C), lambda i: (0, 0)),          # w resident
            pl.BlockSpec((1, C), lambda i: (0, 0)),          # bias resident
        ],
        out_specs=pl.BlockSpec((block_b, C), lambda i: (i, 0)),
        cost_estimate=cost,
        compiler_params=pltpu.CompilerParams(**compiler_kwargs),
    )(x, w, b2)


def init_params(key, input_size, num_classes):
    # Mimic PyTorch nn.Linear default init: U(-1/sqrt(in), 1/sqrt(in))
    kw, kb = jax.random.split(key)
    bound = 1.0 / jnp.sqrt(jnp.float32(input_size))
    # Stored as (F, C) = transpose of PyTorch's (C, F) weight.
    w = jax.random.uniform(
        kw, (input_size, num_classes), jnp.float32, -bound, bound
    )
    b = jax.random.uniform(kb, (num_classes,), jnp.float32, -bound, bound)
    return w, b


if __name__ == "__main__":
    key = jax.random.PRNGKey(0)
    kx, kp, kx2 = jax.random.split(key, 3)

    w, b = init_params(kp, INPUT_SIZE, NUM_CLASSES)

    # Small-batch path (no grid, no host-side padding).
    batch = 8
    x = jax.random.normal(kx, (batch, INPUT_SIZE), jnp.float32)
    out = jax.block_until_ready(simple_classifier(x, w, b))
    ref = x @ w + b
    assert out.shape == (batch, NUM_CLASSES)
    assert jnp.allclose(out, ref, atol=1e-5, rtol=1e-5)

    # Tiled grid path (forced via gridless_max_rows=0), non-multiple batch to
    # exercise the partial last block handled by Pallas boundary masking
    # (no host-side B padding or output slicing).
    batch2 = 300
    x2 = jax.random.normal(kx2, (batch2, INPUT_SIZE), jnp.float32)
    out2 = jax.block_until_ready(
        simple_classifier(x2, w, b, block_b=128, gridless_max_rows=0))
    ref2 = x2 @ w + b
    assert out2.shape == (batch2, NUM_CLASSES)
    assert jnp.allclose(out2, ref2, atol=1e-5, rtol=1e-5)

    print("KERNEL_OK")
</pallas_src>

<mosaic_0001>
module attributes {stable_mosaic.version = 11 : i64} {
  func.func @_linear_kernel(%arg0: memref<8x100xf32, #tpu.memory_space<vmem>>, %arg1: memref<100x2xf32, #tpu.memory_space<vmem>>, %arg2: memref<1x2xf32, #tpu.memory_space<vmem>>, %arg3: memref<8x2xf32, #tpu.memory_space<vmem>>) attributes {dimension_semantics = [], scalar_prefetch = 0 : i64, scratch_operands = 0 : i64, tpu.core_type = #tpu.core_type<tc>} {
    %c0 = arith.constant 0 : index
    %c0_0 = arith.constant 0 : index
    %0 = vector.load %arg0[%c0, %c0_0] : memref<8x100xf32, #tpu.memory_space<vmem>>, vector<8x100xf32>
    %c0_1 = arith.constant 0 : index
    %c0_2 = arith.constant 0 : index
    %1 = vector.load %arg1[%c0_1, %c0_2] : memref<100x2xf32, #tpu.memory_space<vmem>>, vector<100x2xf32>
    %cst = arith.constant dense<0.000000e+00> : vector<8x2xf32>
    %2 = tpu.matmul %0, %1, %cst {dimension_numbers = #tpu.dot_dimension_numbers<[1], [0], [0], [1], [0, 0, 1, 1], [], []>} : vector<8x100xf32>, vector<100x2xf32>, vector<8x2xf32> -> vector<8x2xf32>
    %c0_3 = arith.constant 0 : index
    %c0_4 = arith.constant 0 : index
    %3 = vector.load %arg2[%c0_3, %c0_4] : memref<1x2xf32, #tpu.memory_space<vmem>>, vector<1x2xf32>
    %4 = vector.broadcast %3 : vector<1x2xf32> to vector<8x2xf32>
    %5 = arith.addf %2, %4 : vector<8x2xf32>
    %c0_5 = arith.constant 0 : index
    %c0_6 = arith.constant 0 : index
    %6 = vector.load %arg3[%c0_5, %c0_6] : memref<8x2xf32, #tpu.memory_space<vmem>>, vector<8x2xf32>
    tpu.vector_store %arg3[%c0_5, %c0_6], %5 {strides = array<i32>} : memref<8x2xf32, #tpu.memory_space<vmem>>, vector<8x2xf32>,
    return
  }
}

</mosaic_0001>

<llo_original>
// kernel: tpu_custom_call.1
$region0: #{tpu_custom_call.1}
  #allocation0 [shape = 'u32[]', space=smem, size = 0x4, offset = 0x4, fixed_abs, tag = 'smem constant byte address 0x4 - core index']
  #allocation1 [shape = 'u32[144,128]{1,0:T(1,128)}', space=vmem, size = 0x12000, scoped, tag = 'internal scratch']
  %s0 = inlined_call_operand.vmem [shape: f32[8,100], index: 0, kind: input, shape index: {}]
  %s1 = inlined_call_operand.vmem [shape: f32[100,2], index: 1, kind: input, shape index: {}]
  %s2 = inlined_call_operand.vmem [shape: f32[1,2], index: 2, kind: input, shape index: {}]
  %s3 = inlined_call_operand.vmem [shape: f32[8,2], index: 3, kind: output, shape index: {}]
  %s4 = sld [smem:[#allocation0]]
  $region22: #{tpu_custom_call.1} parent=0
    _
  %s6 = ssub.s32 1, %s4
  %s7 = scalar_select 0, %s6, %s4
  // Predicated region
  $region2: #{tpu_custom_call.1} parent=0 // pred_check
    _
  $region3: #{tpu_custom_call.1} parent=0 // pred_check_branch
    %9 = sbr.rel (0) target = $region5
  $region4: #{tpu_custom_call.1} parent=0 // pred_region
    _
  $region5: #{tpu_custom_call.1} parent=0 // pred_fallthru
    _
  // Predicated region
  $region6: #{tpu_custom_call.1} parent=0 // pred_check
    _
  $region7: #{tpu_custom_call.1} parent=0 // pred_check_branch
    %11 = sbr.rel (0) target = $region9
  $region8: #{tpu_custom_call.1} parent=0 // pred_region
    _
  $region9: #{tpu_custom_call.1} parent=0 // pred_fallthru
    _
  // Predicated region
  $region10: #{tpu_custom_call.1} parent=0 // pred_check
    _
  $region11: #{tpu_custom_call.1} parent=0 // pred_check_branch
    %13 = sbr.rel (0) target = $region13
  $region12: #{tpu_custom_call.1} parent=0 // pred_region
    _
  $region13: #{tpu_custom_call.1} parent=0 // pred_fallthru
    _
  %v14 = vld [vmem:[%s0] sm:$0xff]
  %v15 = vld [vmem:[%s1] sm:$0xff]
  %v16 = vld [vmem:[%s1 + $0x8] sm:$0xff]
  %v17 = vld [vmem:[%s1 + $0x10] sm:$0xff]
  %v18 = vld [vmem:[%s1 + $0x18] sm:$0xff]
  %v19 = vld [vmem:[%s1 + $0x20] sm:$0xff]
  %v20 = vld [vmem:[%s1 + $0x28] sm:$0xff]
  %v21 = vld [vmem:[%s1 + $0x30] sm:$0xff]
  %v22 = vld [vmem:[%s1 + $0x38] sm:$0xff]
  %v23 = vld [vmem:[%s1 + $0x40] sm:$0xff]
  %v24 = vld [vmem:[%s1 + $0x48] sm:$0xff]
  %v25 = vld [vmem:[%s1 + $0x50] sm:$0xff]
  %v26 = vld [vmem:[%s1 + $0x58] sm:$0xff]
  %v27 = vld [vmem:[%s1 + $0x60] sm:$0xf]
  %v28 = vld [vmem:[%s2] sm:$0x1]
  %v30 = vlaneseq
  %v31 = vshrl.u32 %v30, 7
  %v32 = vsub.s32 0, %v31
  %v33 = vrot.slane %v28, %v32
  %vm35 = vcmask 818176
  %v37 = vsel %vm35, %v14, 0
  %vm39 = vcmask 1043456
  %v41 = vsel %vm39, %v27, 0
  %43 = vmatprep.subr.mxu0 0.0
  %44 = vmatpush1.msra.mxu0 %v15
  %45 = vmatprep.subr.mxu0 0.0
  %46 = vmatpush1.msra.mxu0 %v16
  %47 = vmatprep.subr.mxu0 0.0
  %48 = vmatpush1.msra.mxu0 %v17
  %49 = vmatprep.subr.mxu0 0.0
  %50 = vmatpush1.msra.mxu0 %v18
  %51 = vmatprep.subr.mxu0 0.0
  %52 = vmatpush1.msra.mxu0 %v19
  %53 = vmatprep.subr.mxu0 0.0
  %54 = vmatpush1.msra.mxu0 %v20
  %55 = vmatprep.subr.mxu0 0.0
  %56 = vmatpush1.msra.mxu0 %v21
  %57 = vmatprep.subr.mxu0 0.0
  %58 = vmatpush1.msra.mxu0 %v22
  %59 = vmatprep.subr.mxu0 0.0
  %60 = vmatpush1.msra.mxu0 %v23
  %61 = vmatprep.subr.mxu0 0.0
  %62 = vmatpush1.msra.mxu0 %v24
  %63 = vmatprep.subr.mxu0 0.0
  %64 = vmatpush1.msra.mxu0 %v25
  %65 = vmatprep.subr.mxu0 0.0
  %66 = vmatpush1.msra.mxu0 %v26
  %67 = vmatprep.subr.mxu0 0.0
  %68 = vmatpush1.msra.mxu0 %v41
  %69 = vmatprep.subr.mxu0 0.0
  %70 = vmatpush1.msra.mxu0 0.0
  %71 = vmatprep.subr.mxu0 0.0
  %72 = vmatpush1.msra.mxu0 0.0
  %73 = vmatprep.subr.mxu0 0.0
  %74 = vmatpush1.msra.mxu0 0.0
  %75 = vmatprep.subr.mxu0 0.0
  %76 = vmatpush1.msra.mxu0 0.0
  %77 = vmatprep.subr.mxu0 0.0
  %78 = vmatpush1.msra.mxu0 0.0
  %79 = vmatprep.subr.mxu0 0.0
  %80 = vmatpush1.msra.mxu0 0.0
  %81 = vmatprep.subr.mxu0 0.0
  %82 = vmatpush1.msra.mxu0 0.0
  %83 = vmatprep.subr.mxu0 0.0
  %84 = vmatpush1.msra.mxu0 0.0
  %85 = vmatprep.subr.mxu0 0.0
  %86 = vmatpush1.msra.mxu0 0.0
  %87 = vmatprep.subr.mxu0 0.0
  %88 = vmatpush1.msra.mxu0 0.0
  %89 = vmatprep.subr.mxu0 0.0
  %90 = vmatpush1.msra.mxu0 0.0
  %91 = vmatprep.subr.mxu0 0.0
  %92 = vmatpush1.msra.mxu0 0.0
  %93 = vmatprep.subr.mxu0 0.0
  %94 = vmatpush1.msra.mxu0 0.0
  %95 = vmatprep.subr.mxu0 0.0
  %96 = vmatpush1.msra.mxu0 0.0
  %97 = vmatprep.subr.mxu0 0.0
  %98 = vmatpush1.msra.mxu0 0.0
  %99 = vmatprep.subr.mxu0 0.0
  %100 = vmatpush1.msra.mxu0 0.0
  %101 = vmatprep.subr.mxu0 0.0
  %102 = vmatpush1.msra.mxu0 0.0
  %103 = vmatprep.subr.mxu0 0.0
  %104 = vmatpush1.msra.mxu0 0.0
  %105 = vmatprep.subr.mxu0 0.0
  %106 = vmatpush1.msra.mxu0 0.0
  %107 = vmatprep.mubr.f32.mxu0 0.0
  %108 = vmatmul.mubr.f32.gmra.mrb[0].mxu0 %v37
  %v109 = vpop.f32.mrb[0].mxu0
  %v110 = vadd.f32 %v33, %v109
  %v111 = vpop.f32.mrb[0].mxu0
  %112 = vdwg.mxu0
  %vm113 = vcmask 15360
  %114 = vst.msk [vmem:[%s3] sm:$0xff] %vm113, %v110
  // Predicated region
  $region14: #{tpu_custom_call.1} parent=0 // pred_check
    _
  $region15: #{tpu_custom_call.1} parent=0 // pred_check_branch
    %116 = sbr.rel (0) target = $region17
  $region16: #{tpu_custom_call.1} parent=0 // pred_region
    _
  $region17: #{tpu_custom_call.1} parent=0 // pred_fallthru
    _
  // Predicated region
  $region18: #{tpu_custom_call.1} parent=0 // pred_check
    _
  $region19: #{tpu_custom_call.1} parent=0 // pred_check_branch
    %118 = sbr.rel (0) target = $region21
  $region20: #{tpu_custom_call.1} parent=0 // pred_region
    _
  $region21: #{tpu_custom_call.1} parent=0 // pred_fallthru
    _

</llo_original>
